<compile_context>
chip_gen: v5e
topology: v5e:2x2
jax: 0.10.0
libtpu: 0.0.40
codegen_flags: <defaults>
</compile_context>

<pallas_src>
import functools

import jax
import jax.numpy as jnp
from jax.experimental import pallas as pl
from jax.experimental.pallas import tpu as pltpu


def _round_up(x: int, m: int) -> int:
    return ((x + m - 1) // m) * m


def _fmix32(h):
    """murmur3-style 32-bit finalizer (int32 arithmetic, wraps like uint32)."""
    h = h ^ jax.lax.shift_right_logical(h, 16)
    h = h * jnp.int32(2146120493)       # 0x7feb352d
    h = h ^ jax.lax.shift_right_logical(h, 15)
    h = h * jnp.int32(-2072795509)      # 0x846ca68b
    h = h ^ jax.lax.shift_right_logical(h, 16)
    return h


def _erfinv_f32(x):
    """Giles (2010) single-precision erfinv approximation (log/sqrt/poly only)."""
    w = -jnp.log((1.0 - x) * (1.0 + x))

    # Central branch (w < 5).
    w1 = w - 2.5
    p1 = jnp.float32(2.81022636e-08)
    for c in (3.43273939e-07, -3.5233877e-06, -4.39150654e-06, 2.1858087e-04,
              -1.25372503e-03, -4.17768164e-03, 2.46640727e-01, 1.50140941e+00):
        p1 = p1 * w1 + jnp.float32(c)

    # Tail branch (w >= 5).
    w2 = jnp.sqrt(w) - 3.0
    p2 = jnp.float32(-2.00214257e-04)
    for c in (1.00950558e-04, 1.34934322e-03, -3.67342844e-03, 5.73950773e-03,
              -7.6224613e-03, 9.43887047e-03, 1.00167406e+00, 2.83297682e+00):
        p2 = p2 * w2 + jnp.float32(c)

    return jnp.where(w < 5.0, p1, p2) * x


def _noise_kernel(seed_ref, o_ref, *, std: float, tm: int, tn: int):
    # Global linear index of every element in this tile (int32; fine for
    # tensors < 2^31 elements).
    i = pl.program_id(0)
    base = i * (tm * tn)
    rows = jax.lax.broadcasted_iota(jnp.int32, (tm, tn), 0)
    cols = jax.lax.broadcasted_iota(jnp.int32, (tm, tn), 1)
    idx = base + rows * tn + cols

    # Counter-based PRNG: hash(global_index, seed). Unique per element, so the
    # stream is identical for any tiling and no two tiles repeat noise.
    seed = seed_ref[0]
    h = idx ^ seed
    h = _fmix32(h)
    h = h + jnp.int32(-1640531527)      # 0x9E3779B9 (golden ratio), decorrelate
    h = _fmix32(h)

    # Top 24 bits -> uniform in (0, 1), strictly exclusive.
    bits24 = jax.lax.shift_right_logical(h, 8)
    u = (bits24.astype(jnp.float32) + 0.5) * jnp.float32(2.0 ** -24)

    # Inverse-CDF transform to N(0, 1) (all f32, cast only at the store).
    z = jnp.float32(1.4142135623730951) * _erfinv_f32(2.0 * u - 1.0)

    # NOTE: intentional fidelity to the torch quirk: .mul_(std).add_(std)
    # adds `std`, NOT `mean`.
    o_ref[...] = (z * jnp.float32(std) + jnp.float32(std)).astype(o_ref.dtype)


def noise_forward(x: jax.Array, seed: int, *, stride: int = 1,
                  mean: float = 0.0, std: float = 1.0) -> jax.Array:
    """JAX/Pallas equivalent of Noise.forward. `mean` is unused, matching torch."""
    del mean  # the PyTorch module never uses it
    N, C, H, W = x.shape  # layout: NCHW (same as the PyTorch module)

    # Fold the stride into the generated shape (i.i.d. noise -> equivalent).
    Hs = -(-H // stride)
    Ws = -(-W // stride)
    total = N * C * Hs * Ws

    # Lane-dense tiling of the flattened output: TN is a multiple of 128
    # (unmasked vst), TM keeps each block ~<=2 MiB f32 so double-buffering
    # stays well under v7x's smaller VMEM.
    TN = min(1024, _round_up(total, 128))
    rows = pl.cdiv(total, TN)
    TM = min(512, _round_up(rows, 8))
    rows_pad = _round_up(rows, TM)
    grid = (rows_pad // TM,)

    seed_arr = jnp.asarray([seed], dtype=jnp.int32)

    out2d = pl.pallas_call(
        functools.partial(_noise_kernel, std=float(std), tm=TM, tn=TN),
        out_shape=jax.ShapeDtypeStruct((rows_pad, TN), x.dtype),
        grid=grid,
        in_specs=[pl.BlockSpec(memory_space=pltpu.MemorySpace.SMEM)],
        out_specs=pl.BlockSpec((TM, TN), lambda i: (i, 0)),
        compiler_params=pltpu.CompilerParams(
            dimension_semantics=("parallel",)),
    )(seed_arr)

    # Drop padding and restore the (strided) NCHW shape. Pure indexing glue.
    return out2d.reshape(-1)[:total].reshape(N, C, Hs, Ws)


if __name__ == "__main__":
    key = jax.random.PRNGKey(0)
    x = jax.random.normal(key, (2, 4, 16, 16), dtype=jnp.float32)

    # stride=1, mean=0.0, std=1.0 (module defaults)
    out = jax.block_until_ready(noise_forward(x, seed=0, stride=1, std=1.0))
    assert out.shape == x.shape and out.dtype == x.dtype
    assert bool(jnp.all(jnp.isfinite(out)))
    # Loose statistical sanity: samples ~ N(std, std) = N(1, 1) here.
    assert abs(float(out.mean()) - 1.0) < 0.2
    assert abs(float(out.std()) - 1.0) < 0.25

    # Strided path (stride=2): only the subsampled shape is generated.
    out_s = jax.block_until_ready(noise_forward(x, seed=1, stride=2, std=2.0))
    assert out_s.shape == (2, 4, 8, 8) and out_s.dtype == x.dtype
    assert bool(jnp.all(jnp.isfinite(out_s)))

    print("KERNEL_OK")
</pallas_src>

<mosaic_0001>
module attributes {stable_mosaic.version = 11 : i64} {
  func.func @_noise_kernel(%arg0: i32, %arg1: memref<1xi32, #tpu.memory_space<smem>>, %arg2: memref<8x1024xf32, #tpu.memory_space<vmem>>) attributes {dimension_semantics = [#tpu.dimension_semantics<parallel>], iteration_bounds = array<i64: 1>, scalar_prefetch = 0 : i64, scratch_operands = 0 : i64, tpu.core_type = #tpu.core_type<tc>, window_params = [{transform_indices = @transform_0, window_bounds = array<i64: 1>}, {transform_indices = @transform_1, window_bounds = array<i64: 8, 1024>}]} {
    %c8192_i32 = arith.constant 8192 : i32
    %0 = arith.muli %arg0, %c8192_i32 : i32
    %1 = tpu.iota {dimensions = array<i32: 0>} : vector<8x1024xi32>
    %2 = tpu.iota {dimensions = array<i32: 1>} : vector<8x1024xi32>
    %c1024_i32 = arith.constant 1024 : i32
    %3 = vector.broadcast %c1024_i32 : i32 to vector<8x1024xi32>
    %4 = arith.muli %1, %3 : vector<8x1024xi32>
    %5 = vector.broadcast %0 : i32 to vector<8x1024xi32>
    %6 = arith.addi %5, %4 : vector<8x1024xi32>
    %7 = arith.addi %6, %2 : vector<8x1024xi32>
    %c0 = arith.constant 0 : index
    %8 = memref.load %arg1[%c0] : memref<1xi32, #tpu.memory_space<smem>>
    %9 = vector.broadcast %8 : i32 to vector<8x1024xi32>
    %10 = arith.xori %7, %9 : vector<8x1024xi32>
    %c16_i32 = arith.constant 16 : i32
    %11 = vector.broadcast %c16_i32 : i32 to vector<8x1024xi32>
    %12 = arith.shrui %10, %11 : vector<8x1024xi32>
    %13 = arith.xori %10, %12 : vector<8x1024xi32>
    %c2146120493_i32 = arith.constant 2146120493 : i32
    %14 = vector.broadcast %c2146120493_i32 : i32 to vector<8x1024xi32>
    %15 = arith.muli %13, %14 : vector<8x1024xi32>
    %c15_i32 = arith.constant 15 : i32
    %16 = vector.broadcast %c15_i32 : i32 to vector<8x1024xi32>
    %17 = arith.shrui %15, %16 : vector<8x1024xi32>
    %18 = arith.xori %15, %17 : vector<8x1024xi32>
    %c-2072795509_i32 = arith.constant -2072795509 : i32
    %19 = vector.broadcast %c-2072795509_i32 : i32 to vector<8x1024xi32>
    %20 = arith.muli %18, %19 : vector<8x1024xi32>
    %c16_i32_0 = arith.constant 16 : i32
    %21 = vector.broadcast %c16_i32_0 : i32 to vector<8x1024xi32>
    %22 = arith.shrui %20, %21 : vector<8x1024xi32>
    %23 = arith.xori %20, %22 : vector<8x1024xi32>
    %c-1640531527_i32 = arith.constant -1640531527 : i32
    %24 = vector.broadcast %c-1640531527_i32 : i32 to vector<8x1024xi32>
    %25 = arith.addi %23, %24 : vector<8x1024xi32>
    %c16_i32_1 = arith.constant 16 : i32
    %26 = vector.broadcast %c16_i32_1 : i32 to vector<8x1024xi32>
    %27 = arith.shrui %25, %26 : vector<8x1024xi32>
    %28 = arith.xori %25, %27 : vector<8x1024xi32>
    %c2146120493_i32_2 = arith.constant 2146120493 : i32
    %29 = vector.broadcast %c2146120493_i32_2 : i32 to vector<8x1024xi32>
    %30 = arith.muli %28, %29 : vector<8x1024xi32>
    %c15_i32_3 = arith.constant 15 : i32
    %31 = vector.broadcast %c15_i32_3 : i32 to vector<8x1024xi32>
    %32 = arith.shrui %30, %31 : vector<8x1024xi32>
    %33 = arith.xori %30, %32 : vector<8x1024xi32>
    %c-2072795509_i32_4 = arith.constant -2072795509 : i32
    %34 = vector.broadcast %c-2072795509_i32_4 : i32 to vector<8x1024xi32>
    %35 = arith.muli %33, %34 : vector<8x1024xi32>
    %c16_i32_5 = arith.constant 16 : i32
    %36 = vector.broadcast %c16_i32_5 : i32 to vector<8x1024xi32>
    %37 = arith.shrui %35, %36 : vector<8x1024xi32>
    %38 = arith.xori %35, %37 : vector<8x1024xi32>
    %c8_i32 = arith.constant 8 : i32
    %39 = vector.broadcast %c8_i32 : i32 to vector<8x1024xi32>
    %40 = arith.shrui %38, %39 : vector<8x1024xi32>
    %41 = arith.sitofp %40 : vector<8x1024xi32> to vector<8x1024xf32>
    %cst = arith.constant 5.000000e-01 : f32
    %42 = vector.broadcast %cst : f32 to vector<8x1024xf32>
    %43 = arith.addf %41, %42 : vector<8x1024xf32>
    %cst_6 = arith.constant 5.96046448E-8 : f32
    %44 = vector.broadcast %cst_6 : f32 to vector<8x1024xf32>
    %45 = arith.mulf %43, %44 : vector<8x1024xf32>
    %cst_7 = arith.constant 2.000000e+00 : f32
    %46 = vector.broadcast %cst_7 : f32 to vector<8x1024xf32>
    %47 = arith.mulf %46, %45 : vector<8x1024xf32>
    %cst_8 = arith.constant 1.000000e+00 : f32
    %48 = vector.broadcast %cst_8 : f32 to vector<8x1024xf32>
    %49 = arith.subf %47, %48 : vector<8x1024xf32>
    %cst_9 = arith.constant 1.000000e+00 : f32
    %50 = vector.broadcast %cst_9 : f32 to vector<8x1024xf32>
    %51 = arith.subf %50, %49 : vector<8x1024xf32>
    %cst_10 = arith.constant 1.000000e+00 : f32
    %52 = vector.broadcast %cst_10 : f32 to vector<8x1024xf32>
    %53 = arith.addf %52, %49 : vector<8x1024xf32>
    %54 = arith.mulf %51, %53 : vector<8x1024xf32>
    %55 = math.log %54 : vector<8x1024xf32>
    %cst_11 = arith.constant 0.000000e+00 : f32
    %56 = vector.broadcast %cst_11 : f32 to vector<8x1024xf32>
    %57 = arith.subf %56, %55 : vector<8x1024xf32>
    %cst_12 = arith.constant 2.500000e+00 : f32
    %58 = vector.broadcast %cst_12 : f32 to vector<8x1024xf32>
    %59 = arith.subf %57, %58 : vector<8x1024xf32>
    %cst_13 = arith.constant 2.81022636E-8 : f32
    %60 = vector.broadcast %cst_13 : f32 to vector<8x1024xf32>
    %61 = arith.mulf %60, %59 : vector<8x1024xf32>
    %cst_14 = arith.constant 3.43273939E-7 : f32
    %62 = vector.broadcast %cst_14 : f32 to vector<8x1024xf32>
    %63 = arith.addf %61, %62 : vector<8x1024xf32>
    %64 = arith.mulf %63, %59 : vector<8x1024xf32>
    %cst_15 = arith.constant -3.5233877E-6 : f32
    %65 = vector.broadcast %cst_15 : f32 to vector<8x1024xf32>
    %66 = arith.addf %64, %65 : vector<8x1024xf32>
    %67 = arith.mulf %66, %59 : vector<8x1024xf32>
    %cst_16 = arith.constant -4.39150654E-6 : f32
    %68 = vector.broadcast %cst_16 : f32 to vector<8x1024xf32>
    %69 = arith.addf %67, %68 : vector<8x1024xf32>
    %70 = arith.mulf %69, %59 : vector<8x1024xf32>
    %cst_17 = arith.constant 2.1858087E-4 : f32
    %71 = vector.broadcast %cst_17 : f32 to vector<8x1024xf32>
    %72 = arith.addf %70, %71 : vector<8x1024xf32>
    %73 = arith.mulf %72, %59 : vector<8x1024xf32>
    %cst_18 = arith.constant -0.00125372503 : f32
    %74 = vector.broadcast %cst_18 : f32 to vector<8x1024xf32>
    %75 = arith.addf %73, %74 : vector<8x1024xf32>
    %76 = arith.mulf %75, %59 : vector<8x1024xf32>
    %cst_19 = arith.constant -0.00417768164 : f32
    %77 = vector.broadcast %cst_19 : f32 to vector<8x1024xf32>
    %78 = arith.addf %76, %77 : vector<8x1024xf32>
    %79 = arith.mulf %78, %59 : vector<8x1024xf32>
    %cst_20 = arith.constant 0.246640727 : f32
    %80 = vector.broadcast %cst_20 : f32 to vector<8x1024xf32>
    %81 = arith.addf %79, %80 : vector<8x1024xf32>
    %82 = arith.mulf %81, %59 : vector<8x1024xf32>
    %cst_21 = arith.constant 1.50140941 : f32
    %83 = vector.broadcast %cst_21 : f32 to vector<8x1024xf32>
    %84 = arith.addf %82, %83 : vector<8x1024xf32>
    %85 = math.sqrt %57 : vector<8x1024xf32>
    %cst_22 = arith.constant 3.000000e+00 : f32
    %86 = vector.broadcast %cst_22 : f32 to vector<8x1024xf32>
    %87 = arith.subf %85, %86 : vector<8x1024xf32>
    %cst_23 = arith.constant -2.00214257E-4 : f32
    %88 = vector.broadcast %cst_23 : f32 to vector<8x1024xf32>
    %89 = arith.mulf %88, %87 : vector<8x1024xf32>
    %cst_24 = arith.constant 1.00950558E-4 : f32
    %90 = vector.broadcast %cst_24 : f32 to vector<8x1024xf32>
    %91 = arith.addf %89, %90 : vector<8x1024xf32>
    %92 = arith.mulf %91, %87 : vector<8x1024xf32>
    %cst_25 = arith.constant 0.00134934322 : f32
    %93 = vector.broadcast %cst_25 : f32 to vector<8x1024xf32>
    %94 = arith.addf %92, %93 : vector<8x1024xf32>
    %95 = arith.mulf %94, %87 : vector<8x1024xf32>
    %cst_26 = arith.constant -0.00367342844 : f32
    %96 = vector.broadcast %cst_26 : f32 to vector<8x1024xf32>
    %97 = arith.addf %95, %96 : vector<8x1024xf32>
    %98 = arith.mulf %97, %87 : vector<8x1024xf32>
    %cst_27 = arith.constant 0.00573950773 : f32
    %99 = vector.broadcast %cst_27 : f32 to vector<8x1024xf32>
    %100 = arith.addf %98, %99 : vector<8x1024xf32>
    %101 = arith.mulf %100, %87 : vector<8x1024xf32>
    %cst_28 = arith.constant -0.0076224613 : f32
    %102 = vector.broadcast %cst_28 : f32 to vector<8x1024xf32>
    %103 = arith.addf %101, %102 : vector<8x1024xf32>
    %104 = arith.mulf %103, %87 : vector<8x1024xf32>
    %cst_29 = arith.constant 0.00943887047 : f32
    %105 = vector.broadcast %cst_29 : f32 to vector<8x1024xf32>
    %106 = arith.addf %104, %105 : vector<8x1024xf32>
    %107 = arith.mulf %106, %87 : vector<8x1024xf32>
    %cst_30 = arith.constant 1.00167406 : f32
    %108 = vector.broadcast %cst_30 : f32 to vector<8x1024xf32>
    %109 = arith.addf %107, %108 : vector<8x1024xf32>
    %110 = arith.mulf %109, %87 : vector<8x1024xf32>
    %cst_31 = arith.constant 2.83297682 : f32
    %111 = vector.broadcast %cst_31 : f32 to vector<8x1024xf32>
    %112 = arith.addf %110, %111 : vector<8x1024xf32>
    %cst_32 = arith.constant 5.000000e+00 : f32
    %113 = vector.broadcast %cst_32 : f32 to vector<8x1024xf32>
    %114 = arith.cmpf olt, %57, %113 : vector<8x1024xf32>
    %115 = arith.select %114, %84, %112 : vector<8x1024xi1>, vector<8x1024xf32>
    %116 = arith.mulf %115, %49 : vector<8x1024xf32>
    %cst_33 = arith.constant 1.41421354 : f32
    %117 = vector.broadcast %cst_33 : f32 to vector<8x1024xf32>
    %118 = arith.mulf %117, %116 : vector<8x1024xf32>
    %cst_34 = arith.constant 1.000000e+00 : f32
    %119 = vector.broadcast %cst_34 : f32 to vector<8x1024xf32>
    %120 = arith.mulf %118, %119 : vector<8x1024xf32>
    %cst_35 = arith.constant 1.000000e+00 : f32
    %121 = vector.broadcast %cst_35 : f32 to vector<8x1024xf32>
    %122 = arith.addf %120, %121 : vector<8x1024xf32>
    %c0_36 = arith.constant 0 : index
    %c0_37 = arith.constant 0 : index
    %123 = vector.load %arg2[%c0_36, %c0_37] : memref<8x1024xf32, #tpu.memory_space<vmem>>, vector<8x1024xf32>
    tpu.vector_store %arg2[%c0_36, %c0_37], %122 {strides = array<i32>} : memref<8x1024xf32, #tpu.memory_space<vmem>>, vector<8x1024xf32>,
    return
  }
  func.func @transform_0(%arg0: i32) -> i32 {
    %c0_i32 = arith.constant 0 : i32
    %c0_i32_0 = arith.constant 0 : i32
    return %c0_i32 : i32
  }
  func.func @transform_1(%arg0: i32) -> (i32, i32) {
    %c0_i32 = arith.constant 0 : i32
    %c0_i32_0 = arith.constant 0 : i32
    return %arg0, %c0_i32 : i32, i32
  }
}

</mosaic_0001>

<llo_original>
// kernel: tpu_custom_call.1
$region0: #{tpu_custom_call.1}
  #allocation0 [shape = 'u32[]', space=smem, size = 0x4, offset = 0x4, fixed_abs, tag = 'smem constant byte address 0x4 - core index']
  #allocation1 [shape = 'u32[72,128]{1,0:T(1,128)}', space=vmem, size = 0x9000, scoped, tag = 'internal scratch']
  #allocation2 [shape = 's32[1]{0:T(128)S(6)}', space=smem, size = 0x200, scoped, tag = 'scoped memory for tpu_custom_call.1']
  %s0 = inlined_call_operand.<no memory space> [shape: s32[1], index: 0, kind: input, shape index: {}]
  %s1 = inlined_call_operand.hbm [shape: f32[8,1024], index: 1, kind: output, shape index: {}]
  %s2 = sld [smem:[#allocation0]]
  $region14: #{tpu_custom_call.1} parent=0
    _
  %s4 = ssub.s32 1, %s2
  %s5 = scalar_select 0, %s4, %s2
  %6 = sst [smem:[#allocation2]] %s0
  $region1: #{tpu_custom_call.1} parent=0
    #allocation3 [shape = 'u8[32768]{0}', space=vmem, size = 0x8000, scoped, tag = 'output window, operand 0, single buffered']
    #allocation4 [shape = 's32[1]{0}', space=sflag, size = 0x4, scoped, tag = 'scoped memory for tpu_custom_call.1']
    %7 = vsyncpa [#allocation4], 0
    // Predicated region
    $region2: #{tpu_custom_call.1} parent=1 // pred_check
      _
    $region3: #{tpu_custom_call.1} parent=1 // pred_check_branch
      %9 = sbr.rel (0) target = $region5
    $region4: #{tpu_custom_call.1} parent=1 // pred_region
      _
    $region5: #{tpu_custom_call.1} parent=1 // pred_fallthru
      _
    %s10 = smul.u32 0, 8192
    %v11 = vlaneseq
    %v12 = vshrl.u32 %v11, 7
    %v13 = vlaneseq
    %v14 = vand.u32 %v13, 127
    %v15 = vadd.s32 %v14, 128
    %v16 = vadd.s32 %v14, 256
    %v17 = vadd.s32 %v14, 384
    %v18 = vadd.s32 %v14, 512
    %v19 = vadd.s32 %v14, 640
    %v20 = vadd.s32 %v14, 768
    %v21 = vadd.s32 %v14, 896
    %v22 = vmul.u32 %v12, 1024
    %v23 = vstv %s10
    %v24 = vadd.s32 %v23, %v22
    %v25 = vadd.s32 %v24, %v14
    %v26 = vadd.s32 %v24, %v15
    %v27 = vadd.s32 %v24, %v16
    %v28 = vadd.s32 %v24, %v17
    %v29 = vadd.s32 %v24, %v18
    %v30 = vadd.s32 %v24, %v19
    %v31 = vadd.s32 %v24, %v20
    %v32 = vadd.s32 %v24, %v21
    %s33 = sld [smem:[#allocation2]]
    %v34 = vstv %s33
    %v35 = vxor.u32 %v25, %v34
    %v36 = vxor.u32 %v26, %v34
    %v37 = vxor.u32 %v27, %v34
    %v38 = vxor.u32 %v28, %v34
    %v39 = vxor.u32 %v29, %v34
    %v40 = vxor.u32 %v30, %v34
    %v41 = vxor.u32 %v31, %v34
    %v42 = vxor.u32 %v32, %v34
    %v43 = vshrl.u32 %v35, 16
    %v44 = vshrl.u32 %v36, 16
    %v45 = vshrl.u32 %v37, 16
    %v46 = vshrl.u32 %v38, 16
    %v47 = vshrl.u32 %v39, 16
    %v48 = vshrl.u32 %v40, 16
    %v49 = vshrl.u32 %v41, 16
    %v50 = vshrl.u32 %v42, 16
    %v51 = vxor.u32 %v35, %v43
    %v52 = vxor.u32 %v36, %v44
    %v53 = vxor.u32 %v37, %v45
    %v54 = vxor.u32 %v38, %v46
    %v55 = vxor.u32 %v39, %v47
    %v56 = vxor.u32 %v40, %v48
    %v57 = vxor.u32 %v41, %v49
    %v58 = vxor.u32 %v42, %v50
    %v59 = vmul.u32 %v51, 2146120493
    %v60 = vmul.u32 %v52, 2146120493
    %v61 = vmul.u32 %v53, 2146120493
    %v62 = vmul.u32 %v54, 2146120493
    %v63 = vmul.u32 %v55, 2146120493
    %v64 = vmul.u32 %v56, 2146120493
    %v65 = vmul.u32 %v57, 2146120493
    %v66 = vmul.u32 %v58, 2146120493
    %v67 = vshrl.u32 %v59, 15
    %v68 = vshrl.u32 %v60, 15
    %v69 = vshrl.u32 %v61, 15
    %v70 = vshrl.u32 %v62, 15
    %v71 = vshrl.u32 %v63, 15
    %v72 = vshrl.u32 %v64, 15
    %v73 = vshrl.u32 %v65, 15
    %v74 = vshrl.u32 %v66, 15
    %v75 = vxor.u32 %v59, %v67
    %v76 = vxor.u32 %v60, %v68
    %v77 = vxor.u32 %v61, %v69
    %v78 = vxor.u32 %v62, %v70
    %v79 = vxor.u32 %v63, %v71
    %v80 = vxor.u32 %v64, %v72
    %v81 = vxor.u32 %v65, %v73
    %v82 = vxor.u32 %v66, %v74
    %v83 = vmul.u32 %v75, 2222171787
    %v84 = vmul.u32 %v76, 2222171787
    %v85 = vmul.u32 %v77, 2222171787
    %v86 = vmul.u32 %v78, 2222171787
    %v87 = vmul.u32 %v79, 2222171787
    %v88 = vmul.u32 %v80, 2222171787
    %v89 = vmul.u32 %v81, 2222171787
    %v90 = vmul.u32 %v82, 2222171787
    %v91 = vshrl.u32 %v83, 16
    %v92 = vshrl.u32 %v84, 16
    %v93 = vshrl.u32 %v85, 16
    %v94 = vshrl.u32 %v86, 16
    %v95 = vshrl.u32 %v87, 16
    %v96 = vshrl.u32 %v88, 16
    %v97 = vshrl.u32 %v89, 16
    %v98 = vshrl.u32 %v90, 16
    %v99 = vxor.u32 %v83, %v91
    %v100 = vxor.u32 %v84, %v92
    %v101 = vxor.u32 %v85, %v93
    %v102 = vxor.u32 %v86, %v94
    %v103 = vxor.u32 %v87, %v95
    %v104 = vxor.u32 %v88, %v96
    %v105 = vxor.u32 %v89, %v97
    %v106 = vxor.u32 %v90, %v98
    %v107 = vadd.s32 %v99, 2654435769
    %v108 = vadd.s32 %v100, 2654435769
    %v109 = vadd.s32 %v101, 2654435769
    %v110 = vadd.s32 %v102, 2654435769
    %v111 = vadd.s32 %v103, 2654435769
    %v112 = vadd.s32 %v104, 2654435769
    %v113 = vadd.s32 %v105, 2654435769
    %v114 = vadd.s32 %v106, 2654435769
    %v115 = vshrl.u32 %v107, 16
    %v116 = vshrl.u32 %v108, 16
    %v117 = vshrl.u32 %v109, 16
    %v118 = vshrl.u32 %v110, 16
    %v119 = vshrl.u32 %v111, 16
    %v120 = vshrl.u32 %v112, 16
    %v121 = vshrl.u32 %v113, 16
    %v122 = vshrl.u32 %v114, 16
    %v123 = vxor.u32 %v107, %v115
    %v124 = vxor.u32 %v108, %v116
    %v125 = vxor.u32 %v109, %v117
    %v126 = vxor.u32 %v110, %v118
    %v127 = vxor.u32 %v111, %v119
    %v128 = vxor.u32 %v112, %v120
    %v129 = vxor.u32 %v113, %v121
    %v130 = vxor.u32 %v114, %v122
    %v131 = vmul.u32 %v123, 2146120493
    %v132 = vmul.u32 %v124, 2146120493
    %v133 = vmul.u32 %v125, 2146120493
    %v134 = vmul.u32 %v126, 2146120493
    %v135 = vmul.u32 %v127, 2146120493
    %v136 = vmul.u32 %v128, 2146120493
    %v137 = vmul.u32 %v129, 2146120493
    %v138 = vmul.u32 %v130, 2146120493
    %v139 = vshrl.u32 %v131, 15
    %v140 = vshrl.u32 %v132, 15
    %v141 = vshrl.u32 %v133, 15
    %v142 = vshrl.u32 %v134, 15
    %v143 = vshrl.u32 %v135, 15
    %v144 = vshrl.u32 %v136, 15
    %v145 = vshrl.u32 %v137, 15
    %v146 = vshrl.u32 %v138, 15
    %v147 = vxor.u32 %v131, %v139
    %v148 = vxor.u32 %v132, %v140
    %v149 = vxor.u32 %v133, %v141
    %v150 = vxor.u32 %v134, %v142
    %v151 = vxor.u32 %v135, %v143
    %v152 = vxor.u32 %v136, %v144
    %v153 = vxor.u32 %v137, %v145
    %v154 = vxor.u32 %v138, %v146
    %v155 = vmul.u32 %v147, 2222171787
    %v156 = vmul.u32 %v148, 2222171787
    %v157 = vmul.u32 %v149, 2222171787
    %v158 = vmul.u32 %v150, 2222171787
    %v159 = vmul.u32 %v151, 2222171787
    %v160 = vmul.u32 %v152, 2222171787
    %v161 = vmul.u32 %v153, 2222171787
    %v162 = vmul.u32 %v154, 2222171787
    %v163 = vshrl.u32 %v155, 16
    %v164 = vshrl.u32 %v156, 16
    %v165 = vshrl.u32 %v157, 16
    %v166 = vshrl.u32 %v158, 16
    %v167 = vshrl.u32 %v159, 16
    %v168 = vshrl.u32 %v160, 16
    %v169 = vshrl.u32 %v161, 16
    %v170 = vshrl.u32 %v162, 16
    %v171 = vxor.u32 %v155, %v163
    %v172 = vxor.u32 %v156, %v164
    %v173 = vxor.u32 %v157, %v165
    %v174 = vxor.u32 %v158, %v166
    %v175 = vxor.u32 %v159, %v167
    %v176 = vxor.u32 %v160, %v168
    %v177 = vxor.u32 %v161, %v169
    %v178 = vxor.u32 %v162, %v170
    %v179 = vshrl.u32 %v171, 8
    %v180 = vshrl.u32 %v172, 8
    %v181 = vshrl.u32 %v173, 8
    %v182 = vshrl.u32 %v174, 8
    %v183 = vshrl.u32 %v175, 8
    %v184 = vshrl.u32 %v176, 8
    %v185 = vshrl.u32 %v177, 8
    %v186 = vshrl.u32 %v178, 8
    %v187 = vcvt.s32.f32 %v179
    %v188 = vcvt.s32.f32 %v180
    %v189 = vcvt.s32.f32 %v181
    %v190 = vcvt.s32.f32 %v182
    %v191 = vcvt.s32.f32 %v183
    %v192 = vcvt.s32.f32 %v184
    %v193 = vcvt.s32.f32 %v185
    %v194 = vcvt.s32.f32 %v186
    %v195 = vadd.f32 %v187, 0.5
    %v196 = vadd.f32 %v188, 0.5
    %v197 = vadd.f32 %v189, 0.5
    %v198 = vadd.f32 %v190, 0.5
    %v199 = vadd.f32 %v191, 0.5
    %v200 = vadd.f32 %v192, 0.5
    %v201 = vadd.f32 %v193, 0.5
    %v202 = vadd.f32 %v194, 0.5
    %v203 = vmul.f32 %v195, 5.9604645e-08
    %v204 = vmul.f32 %v196, 5.9604645e-08
    %v205 = vmul.f32 %v197, 5.9604645e-08
    %v206 = vmul.f32 %v198, 5.9604645e-08
    %v207 = vmul.f32 %v199, 5.9604645e-08
    %v208 = vmul.f32 %v200, 5.9604645e-08
    %v209 = vmul.f32 %v201, 5.9604645e-08
    %v210 = vmul.f32 %v202, 5.9604645e-08
    %v211 = vmul.f32 %v203, 2.0
    %v212 = vmul.f32 %v204, 2.0
    %v213 = vmul.f32 %v205, 2.0
    %v214 = vmul.f32 %v206, 2.0
    %v215 = vmul.f32 %v207, 2.0
    %v216 = vmul.f32 %v208, 2.0
    %v217 = vmul.f32 %v209, 2.0
    %v218 = vmul.f32 %v210, 2.0
    %v219 = vsub.f32 %v211, 1.0
    %v220 = vsub.f32 %v212, 1.0
    %v221 = vsub.f32 %v213, 1.0
    %v222 = vsub.f32 %v214, 1.0
    %v223 = vsub.f32 %v215, 1.0
    %v224 = vsub.f32 %v216, 1.0
    %v225 = vsub.f32 %v217, 1.0
    %v226 = vsub.f32 %v218, 1.0
    %v227 = vsub.f32 1.0, %v219
    %v228 = vsub.f32 1.0, %v220
    %v229 = vsub.f32 1.0, %v221
    %v230 = vsub.f32 1.0, %v222
    %v231 = vsub.f32 1.0, %v223
    %v232 = vsub.f32 1.0, %v224
    %v233 = vsub.f32 1.0, %v225
    %v234 = vsub.f32 1.0, %v226
    %v235 = vadd.f32 %v219, 1.0
    %v236 = vadd.f32 %v220, 1.0
    %v237 = vadd.f32 %v221, 1.0
    %v238 = vadd.f32 %v222, 1.0
    %v239 = vadd.f32 %v223, 1.0
    %v240 = vadd.f32 %v224, 1.0
    %v241 = vadd.f32 %v225, 1.0
    %v242 = vadd.f32 %v226, 1.0
    %v243 = vmul.f32 %v227, %v235
    %v244 = vmul.f32 %v228, %v236
    %v245 = vmul.f32 %v229, %v237
    %v246 = vmul.f32 %v230, %v238
    %v247 = vmul.f32 %v231, %v239
    %v248 = vmul.f32 %v232, %v240
    %v249 = vmul.f32 %v233, %v241
    %v250 = vmul.f32 %v234, %v242
    %v251 = vlog2.pop %v243
    %v252 = vmul.f32 %v251, 0.6931472
    %v253 = vlog2.pop %v244
    %v254 = vmul.f32 %v253, 0.6931472
    %v255 = vlog2.pop %v245
    %v256 = vmul.f32 %v255, 0.6931472
    %v257 = vlog2.pop %v246
    %v258 = vmul.f32 %v257, 0.6931472
    %v259 = vlog2.pop %v247
    %v260 = vmul.f32 %v259, 0.6931472
    %v261 = vlog2.pop %v248
    %v262 = vmul.f32 %v261, 0.6931472
    %v263 = vlog2.pop %v249
    %v264 = vmul.f32 %v263, 0.6931472
    %v265 = vlog2.pop %v250
    %v266 = vmul.f32 %v265, 0.6931472
    %v267 = vsub.f32 0.0, %v252
    %v268 = vsub.f32 0.0, %v254
    %v269 = vsub.f32 0.0, %v256
    %v270 = vsub.f32 0.0, %v258
    %v271 = vsub.f32 0.0, %v260
    %v272 = vsub.f32 0.0, %v262
    %v273 = vsub.f32 0.0, %v264
    %v274 = vsub.f32 0.0, %v266
    %v275 = vsub.f32 %v267, 2.5
    %v276 = vsub.f32 %v268, 2.5
    %v277 = vsub.f32 %v269, 2.5
    %v278 = vsub.f32 %v270, 2.5
    %v279 = vsub.f32 %v271, 2.5
    %v280 = vsub.f32 %v272, 2.5
    %v281 = vsub.f32 %v273, 2.5
    %v282 = vsub.f32 %v274, 2.5
    %v283 = vmul.f32 %v275, 2.8102264e-08
    %v284 = vmul.f32 %v276, 2.8102264e-08
    %v285 = vmul.f32 %v277, 2.8102264e-08
    %v286 = vmul.f32 %v278, 2.8102264e-08
    %v287 = vmul.f32 %v279, 2.8102264e-08
    %v288 = vmul.f32 %v280, 2.8102264e-08
    %v289 = vmul.f32 %v281, 2.8102264e-08
    %v290 = vmul.f32 %v282, 2.8102264e-08
    %v291 = vadd.f32 %v283, 3.4327394e-07
    %v292 = vadd.f32 %v284, 3.4327394e-07
    %v293 = vadd.f32 %v285, 3.4327394e-07
    %v294 = vadd.f32 %v286, 3.4327394e-07
    %v295 = vadd.f32 %v287, 3.4327394e-07
    %v296 = vadd.f32 %v288, 3.4327394e-07
    %v297 = vadd.f32 %v289, 3.4327394e-07
    %v298 = vadd.f32 %v290, 3.4327394e-07
    %v299 = vmul.f32 %v291, %v275
    %v300 = vmul.f32 %v292, %v276
    %v301 = vmul.f32 %v293, %v277
    %v302 = vmul.f32 %v294, %v278
    %v303 = vmul.f32 %v295, %v279
    %v304 = vmul.f32 %v296, %v280
    %v305 = vmul.f32 %v297, %v281
    %v306 = vmul.f32 %v298, %v282
    %v307 = vadd.f32 %v299, -3.5233877e-06
    %v308 = vadd.f32 %v300, -3.5233877e-06
    %v309 = vadd.f32 %v301, -3.5233877e-06
    %v310 = vadd.f32 %v302, -3.5233877e-06
    %v311 = vadd.f32 %v303, -3.5233877e-06
    %v312 = vadd.f32 %v304, -3.5233877e-06
    %v313 = vadd.f32 %v305, -3.5233877e-06
    %v314 = vadd.f32 %v306, -3.5233877e-06
    %v315 = vmul.f32 %v307, %v275
    %v316 = vmul.f32 %v308, %v276
    %v317 = vmul.f32 %v309, %v277
    %v318 = vmul.f32 %v310, %v278
    %v319 = vmul.f32 %v311, %v279
    %v320 = vmul.f32 %v312, %v280
    %v321 = vmul.f32 %v313, %v281
    %v322 = vmul.f32 %v314, %v282
    %v323 = vadd.f32 %v315, -4.3915065e-06
    %v324 = vadd.f32 %v316, -4.3915065e-06
    %v325 = vadd.f32 %v317, -4.3915065e-06
    %v326 = vadd.f32 %v318, -4.3915065e-06
    %v327 = vadd.f32 %v319, -4.3915065e-06
    %v328 = vadd.f32 %v320, -4.3915065e-06
    %v329 = vadd.f32 %v321, -4.3915065e-06
    %v330 = vadd.f32 %v322, -4.3915065e-06
    %v331 = vmul.f32 %v323, %v275
    %v332 = vmul.f32 %v324, %v276
    %v333 = vmul.f32 %v325, %v277
    %v334 = vmul.f32 %v326, %v278
    %v335 = vmul.f32 %v327, %v279
    %v336 = vmul.f32 %v328, %v280
    %v337 = vmul.f32 %v329, %v281
    %v338 = vmul.f32 %v330, %v282
    %v339 = vadd.f32 %v331, 0.00021858087
    %v340 = vadd.f32 %v332, 0.00021858087
    %v341 = vadd.f32 %v333, 0.00021858087
    %v342 = vadd.f32 %v334, 0.00021858087
    %v343 = vadd.f32 %v335, 0.00021858087
    %v344 = vadd.f32 %v336, 0.00021858087
    %v345 = vadd.f32 %v337, 0.00021858087
    %v346 = vadd.f32 %v338, 0.00021858087
    %v347 = vmul.f32 %v339, %v275
    %v348 = vmul.f32 %v340, %v276
    %v349 = vmul.f32 %v341, %v277
    %v350 = vmul.f32 %v342, %v278
    %v351 = vmul.f32 %v343, %v279
    %v352 = vmul.f32 %v344, %v280
    %v353 = vmul.f32 %v345, %v281
    %v354 = vmul.f32 %v346, %v282
    %v355 = vadd.f32 %v347, -0.001253725
    %v356 = vadd.f32 %v348, -0.001253725
    %v357 = vadd.f32 %v349, -0.001253725
    %v358 = vadd.f32 %v350, -0.001253725
    %v359 = vadd.f32 %v351, -0.001253725
    %v360 = vadd.f32 %v352, -0.001253725
    %v361 = vadd.f32 %v353, -0.001253725
    %v362 = vadd.f32 %v354, -0.001253725
    %v363 = vmul.f32 %v355, %v275
    %v364 = vmul.f32 %v356, %v276
    %v365 = vmul.f32 %v357, %v277
    %v366 = vmul.f32 %v358, %v278
    %v367 = vmul.f32 %v359, %v279
    %v368 = vmul.f32 %v360, %v280
    %v369 = vmul.f32 %v361, %v281
    %v370 = vmul.f32 %v362, %v282
    %v371 = vadd.f32 %v363, -0.0041776816
    %v372 = vadd.f32 %v364, -0.0041776816
    %v373 = vadd.f32 %v365, -0.0041776816
    %v374 = vadd.f32 %v366, -0.0041776816
    %v375 = vadd.f32 %v367, -0.0041776816
    %v376 = vadd.f32 %v368, -0.0041776816
    %v377 = vadd.f32 %v369, -0.0041776816
    %v378 = vadd.f32 %v370, -0.0041776816
    %v379 = vmul.f32 %v371, %v275
    %v380 = vmul.f32 %v372, %v276
    %v381 = vmul.f32 %v373, %v277
    %v382 = vmul.f32 %v374, %v278
    %v383 = vmul.f32 %v375, %v279
    %v384 = vmul.f32 %v376, %v280
    %v385 = vmul.f32 %v377, %v281
    %v386 = vmul.f32 %v378, %v282
    %v387 = vadd.f32 %v379, 0.24664073
    %v388 = vadd.f32 %v380, 0.24664073
    %v389 = vadd.f32 %v381, 0.24664073
    %v390 = vadd.f32 %v382, 0.24664073
    %v391 = vadd.f32 %v383, 0.24664073
    %v392 = vadd.f32 %v384, 0.24664073
    %v393 = vadd.f32 %v385, 0.24664073
    %v394 = vadd.f32 %v386, 0.24664073
    %v395 = vmul.f32 %v387, %v275
    %v396 = vmul.f32 %v388, %v276
    %v397 = vmul.f32 %v389, %v277
    %v398 = vmul.f32 %v390, %v278
    %v399 = vmul.f32 %v391, %v279
    %v400 = vmul.f32 %v392, %v280
    %v401 = vmul.f32 %v393, %v281
    %v402 = vmul.f32 %v394, %v282
    %v403 = vadd.f32 %v395, 1.5014094
    %v404 = vadd.f32 %v396, 1.5014094
    %v405 = vadd.f32 %v397, 1.5014094
    %v406 = vadd.f32 %v398, 1.5014094
    %v407 = vadd.f32 %v399, 1.5014094
    %v408 = vadd.f32 %v400, 1.5014094
    %v409 = vadd.f32 %v401, 1.5014094
    %v410 = vadd.f32 %v402, 1.5014094
    %v411 = vrsqrt.pop %v267
    %v412 = vmul.f32 %v411, %v267
    %v413 = vmul.f32 %v412, %v411
    %v414 = vmul.f32 0.5, %v413
    %v415 = vsub.f32 1.5, %v414
    %v416 = vmul.f32 %v411, %v415
    %v417 = vmul.f32 %v267, %v416
    %vm418 = vcmp.eq.f32.partialorder %v267, inf
    %v419 = vsel %vm418, %v267, %v417
    %vm420 = vcmp.eq.f32.partialorder %v267, 0.0
    %v421 = vand.u32 %v267, 2147483648
    %v422 = vsel %vm420, %v421, %v419
    %v423 = vrsqrt.pop %v268
    %v424 = vmul.f32 %v423, %v268
    %v425 = vmul.f32 %v424, %v423
    %v426 = vmul.f32 0.5, %v425
    %v427 = vsub.f32 1.5, %v426
    %v428 = vmul.f32 %v423, %v427
    %v429 = vmul.f32 %v268, %v428
    %vm430 = vcmp.eq.f32.partialorder %v268, inf
    %v431 = vsel %vm430, %v268, %v429
    %vm432 = vcmp.eq.f32.partialorder %v268, 0.0
    %v433 = vand.u32 %v268, 2147483648
    %v434 = vsel %vm432, %v433, %v431
    %v435 = vrsqrt.pop %v269
    %v436 = vmul.f32 %v435, %v269
    %v437 = vmul.f32 %v436, %v435
    %v438 = vmul.f32 0.5, %v437
    %v439 = vsub.f32 1.5, %v438
    %v440 = vmul.f32 %v435, %v439
    %v441 = vmul.f32 %v269, %v440
    %vm442 = vcmp.eq.f32.partialorder %v269, inf
    %v443 = vsel %vm442, %v269, %v441
    %vm444 = vcmp.eq.f32.partialorder %v269, 0.0
    %v445 = vand.u32 %v269, 2147483648
    %v446 = vsel %vm444, %v445, %v443
    %v447 = vrsqrt.pop %v270
    %v448 = vmul.f32 %v447, %v270
    %v449 = vmul.f32 %v448, %v447
    %v450 = vmul.f32 0.5, %v449
    %v451 = vsub.f32 1.5, %v450
    %v452 = vmul.f32 %v447, %v451
    %v453 = vmul.f32 %v270, %v452
    %vm454 = vcmp.eq.f32.partialorder %v270, inf
    %v455 = vsel %vm454, %v270, %v453
    %vm456 = vcmp.eq.f32.partialorder %v270, 0.0
    %v457 = vand.u32 %v270, 2147483648
    %v458 = vsel %vm456, %v457, %v455
    %v459 = vrsqrt.pop %v271
    %v460 = vmul.f32 %v459, %v271
    %v461 = vmul.f32 %v460, %v459
    %v462 = vmul.f32 0.5, %v461
    %v463 = vsub.f32 1.5, %v462
    %v464 = vmul.f32 %v459, %v463
    %v465 = vmul.f32 %v271, %v464
    %vm466 = vcmp.eq.f32.partialorder %v271, inf
    %v467 = vsel %vm466, %v271, %v465
    %vm468 = vcmp.eq.f32.partialorder %v271, 0.0
    %v469 = vand.u32 %v271, 2147483648
    %v470 = vsel %vm468, %v469, %v467
    %v471 = vrsqrt.pop %v272
    %v472 = vmul.f32 %v471, %v272
    %v473 = vmul.f32 %v472, %v471
    %v474 = vmul.f32 0.5, %v473
    %v475 = vsub.f32 1.5, %v474
    %v476 = vmul.f32 %v471, %v475
    %v477 = vmul.f32 %v272, %v476
    %vm478 = vcmp.eq.f32.partialorder %v272, inf
    %v479 = vsel %vm478, %v272, %v477
    %vm480 = vcmp.eq.f32.partialorder %v272, 0.0
    %v481 = vand.u32 %v272, 2147483648
    %v482 = vsel %vm480, %v481, %v479
    %v483 = vrsqrt.pop %v273
    %v484 = vmul.f32 %v483, %v273
    %v485 = vmul.f32 %v484, %v483
    %v486 = vmul.f32 0.5, %v485
    %v487 = vsub.f32 1.5, %v486
    %v488 = vmul.f32 %v483, %v487
    %v489 = vmul.f32 %v273, %v488
    %vm490 = vcmp.eq.f32.partialorder %v273, inf
    %v491 = vsel %vm490, %v273, %v489
    %vm492 = vcmp.eq.f32.partialorder %v273, 0.0
    %v493 = vand.u32 %v273, 2147483648
    %v494 = vsel %vm492, %v493, %v491
    %v495 = vrsqrt.pop %v274
    %v496 = vmul.f32 %v495, %v274
    %v497 = vmul.f32 %v496, %v495
    %v498 = vmul.f32 0.5, %v497
    %v499 = vsub.f32 1.5, %v498
    %v500 = vmul.f32 %v495, %v499
    %v501 = vmul.f32 %v274, %v500
    %vm502 = vcmp.eq.f32.partialorder %v274, inf
    %v503 = vsel %vm502, %v274, %v501
    %vm504 = vcmp.eq.f32.partialorder %v274, 0.0
    %v505 = vand.u32 %v274, 2147483648
    %v506 = vsel %vm504, %v505, %v503
    %v507 = vsub.f32 %v422, 3.0
    %v508 = vsub.f32 %v434, 3.0
    %v509 = vsub.f32 %v446, 3.0
    %v510 = vsub.f32 %v458, 3.0
    %v511 = vsub.f32 %v470, 3.0
    %v512 = vsub.f32 %v482, 3.0
    %v513 = vsub.f32 %v494, 3.0
    %v514 = vsub.f32 %v506, 3.0
    %v515 = vmul.f32 %v507, -0.00020021426
    %v516 = vmul.f32 %v508, -0.00020021426
    %v517 = vmul.f32 %v509, -0.00020021426
    %v518 = vmul.f32 %v510, -0.00020021426
    %v519 = vmul.f32 %v511, -0.00020021426
    %v520 = vmul.f32 %v512, -0.00020021426
    %v521 = vmul.f32 %v513, -0.00020021426
    %v522 = vmul.f32 %v514, -0.00020021426
    %v523 = vadd.f32 %v515, 0.00010095056
    %v524 = vadd.f32 %v516, 0.00010095056
    %v525 = vadd.f32 %v517, 0.00010095056
    %v526 = vadd.f32 %v518, 0.00010095056
    %v527 = vadd.f32 %v519, 0.00010095056
    %v528 = vadd.f32 %v520, 0.00010095056
    %v529 = vadd.f32 %v521, 0.00010095056
    %v530 = vadd.f32 %v522, 0.00010095056
    %v531 = vmul.f32 %v523, %v507
    %v532 = vmul.f32 %v524, %v508
    %v533 = vmul.f32 %v525, %v509
    %v534 = vmul.f32 %v526, %v510
    %v535 = vmul.f32 %v527, %v511
    %v536 = vmul.f32 %v528, %v512
    %v537 = vmul.f32 %v529, %v513
    %v538 = vmul.f32 %v530, %v514
    %v539 = vadd.f32 %v531, 0.0013493432
    %v540 = vadd.f32 %v532, 0.0013493432
    %v541 = vadd.f32 %v533, 0.0013493432
    %v542 = vadd.f32 %v534, 0.0013493432
    %v543 = vadd.f32 %v535, 0.0013493432
    %v544 = vadd.f32 %v536, 0.0013493432
    %v545 = vadd.f32 %v537, 0.0013493432
    %v546 = vadd.f32 %v538, 0.0013493432
    %v547 = vmul.f32 %v539, %v507
    %v548 = vmul.f32 %v540, %v508
    %v549 = vmul.f32 %v541, %v509
    %v550 = vmul.f32 %v542, %v510
    %v551 = vmul.f32 %v543, %v511
    %v552 = vmul.f32 %v544, %v512
    %v553 = vmul.f32 %v545, %v513
    %v554 = vmul.f32 %v546, %v514
    %v555 = vadd.f32 %v547, -0.0036734284
    %v556 = vadd.f32 %v548, -0.0036734284
    %v557 = vadd.f32 %v549, -0.0036734284
    %v558 = vadd.f32 %v550, -0.0036734284
    %v559 = vadd.f32 %v551, -0.0036734284
    %v560 = vadd.f32 %v552, -0.0036734284
    %v561 = vadd.f32 %v553, -0.0036734284
    %v562 = vadd.f32 %v554, -0.0036734284
    %v563 = vmul.f32 %v555, %v507
    %v564 = vmul.f32 %v556, %v508
    %v565 = vmul.f32 %v557, %v509
    %v566 = vmul.f32 %v558, %v510
    %v567 = vmul.f32 %v559, %v511
    %v568 = vmul.f32 %v560, %v512
    %v569 = vmul.f32 %v561, %v513
    %v570 = vmul.f32 %v562, %v514
    %v571 = vadd.f32 %v563, 0.0057395077
    %v572 = vadd.f32 %v564, 0.0057395077
    %v573 = vadd.f32 %v565, 0.0057395077
    %v574 = vadd.f32 %v566, 0.0057395077
    %v575 = vadd.f32 %v567, 0.0057395077
    %v576 = vadd.f32 %v568, 0.0057395077
    %v577 = vadd.f32 %v569, 0.0057395077
    %v578 = vadd.f32 %v570, 0.0057395077
    %v579 = vmul.f32 %v571, %v507
    %v580 = vmul.f32 %v572, %v508
    %v581 = vmul.f32 %v573, %v509
    %v582 = vmul.f32 %v574, %v510
    %v583 = vmul.f32 %v575, %v511
    %v584 = vmul.f32 %v576, %v512
    %v585 = vmul.f32 %v577, %v513
    %v586 = vmul.f32 %v578, %v514
    %v587 = vadd.f32 %v579, -0.0076224613
    %v588 = vadd.f32 %v580, -0.0076224613
    %v589 = vadd.f32 %v581, -0.0076224613
    %v590 = vadd.f32 %v582, -0.0076224613
    %v591 = vadd.f32 %v583, -0.0076224613
    %v592 = vadd.f32 %v584, -0.0076224613
    %v593 = vadd.f32 %v585, -0.0076224613
    %v594 = vadd.f32 %v586, -0.0076224613
    %v595 = vmul.f32 %v587, %v507
    %v596 = vmul.f32 %v588, %v508
    %v597 = vmul.f32 %v589, %v509
    %v598 = vmul.f32 %v590, %v510
    %v599 = vmul.f32 %v591, %v511
    %v600 = vmul.f32 %v592, %v512
    %v601 = vmul.f32 %v593, %v513
    %v602 = vmul.f32 %v594, %v514
    %v603 = vadd.f32 %v595, 0.0094388705
    %v604 = vadd.f32 %v596, 0.0094388705
    %v605 = vadd.f32 %v597, 0.0094388705
    %v606 = vadd.f32 %v598, 0.0094388705
    %v607 = vadd.f32 %v599, 0.0094388705
    %v608 = vadd.f32 %v600, 0.0094388705
    %v609 = vadd.f32 %v601, 0.0094388705
    %v610 = vadd.f32 %v602, 0.0094388705
    %v611 = vmul.f32 %v603, %v507
    %v612 = vmul.f32 %v604, %v508
    %v613 = vmul.f32 %v605, %v509
    %v614 = vmul.f32 %v606, %v510
    %v615 = vmul.f32 %v607, %v511
    %v616 = vmul.f32 %v608, %v512
    %v617 = vmul.f32 %v609, %v513
    %v618 = vmul.f32 %v610, %v514
    %v619 = vadd.f32 %v611, 1.001674
    %v620 = vadd.f32 %v612, 1.001674
    %v621 = vadd.f32 %v613, 1.001674
    %v622 = vadd.f32 %v614, 1.001674
    %v623 = vadd.f32 %v615, 1.001674
    %v624 = vadd.f32 %v616, 1.001674
    %v625 = vadd.f32 %v617, 1.001674
    %v626 = vadd.f32 %v618, 1.001674
    %v627 = vmul.f32 %v619, %v507
    %v628 = vmul.f32 %v620, %v508
    %v629 = vmul.f32 %v621, %v509
    %v630 = vmul.f32 %v622, %v510
    %v631 = vmul.f32 %v623, %v511
    %v632 = vmul.f32 %v624, %v512
    %v633 = vmul.f32 %v625, %v513
    %v634 = vmul.f32 %v626, %v514
    %v635 = vadd.f32 %v627, 2.8329768
    %v636 = vadd.f32 %v628, 2.8329768
    %v637 = vadd.f32 %v629, 2.8329768
    %v638 = vadd.f32 %v630, 2.8329768
    %v639 = vadd.f32 %v631, 2.8329768
    %v640 = vadd.f32 %v632, 2.8329768
    %v641 = vadd.f32 %v633, 2.8329768
    %v642 = vadd.f32 %v634, 2.8329768
    %vm643 = vcmp.lt.f32.partialorder %v267, 5.0
    %vm644 = vcmp.lt.f32.partialorder %v268, 5.0
    %vm645 = vcmp.lt.f32.partialorder %v269, 5.0
    %vm646 = vcmp.lt.f32.partialorder %v270, 5.0
    %vm647 = vcmp.lt.f32.partialorder %v271, 5.0
    %vm648 = vcmp.lt.f32.partialorder %v272, 5.0
    %vm649 = vcmp.lt.f32.partialorder %v273, 5.0
    %vm650 = vcmp.lt.f32.partialorder %v274, 5.0
    %v651 = vsel %vm643, %v403, %v635
    %v652 = vsel %vm644, %v404, %v636
    %v653 = vsel %vm645, %v405, %v637
    %v654 = vsel %vm646, %v406, %v638
    %v655 = vsel %vm647, %v407, %v639
    %v656 = vsel %vm648, %v408, %v640
    %v657 = vsel %vm649, %v409, %v641
    %v658 = vsel %vm650, %v410, %v642
    %v659 = vmul.f32 %v651, %v219
    %v660 = vmul.f32 %v652, %v220
    %v661 = vmul.f32 %v653, %v221
    %v662 = vmul.f32 %v654, %v222
    %v663 = vmul.f32 %v655, %v223
    %v664 = vmul.f32 %v656, %v224
    %v665 = vmul.f32 %v657, %v225
    %v666 = vmul.f32 %v658, %v226
    %v667 = vmul.f32 %v659, 1.4142135
    %v668 = vmul.f32 %v660, 1.4142135
    %v669 = vmul.f32 %v661, 1.4142135
    %v670 = vmul.f32 %v662, 1.4142135
    %v671 = vmul.f32 %v663, 1.4142135
    %v672 = vmul.f32 %v664, 1.4142135
    %v673 = vmul.f32 %v665, 1.4142135
    %v674 = vmul.f32 %v666, 1.4142135
    %v675 = vadd.f32 %v667, 1.0
    %v676 = vadd.f32 %v668, 1.0
    %v677 = vadd.f32 %v669, 1.0
    %v678 = vadd.f32 %v670, 1.0
    %v679 = vadd.f32 %v671, 1.0
    %v680 = vadd.f32 %v672, 1.0
    %v681 = vadd.f32 %v673, 1.0
    %v682 = vadd.f32 %v674, 1.0
    %683 = vst [vmem:[#allocation3] sm:$0xff] %v675
    %684 = vst [vmem:[#allocation3 + $0x8] sm:$0xff] %v676
    %685 = vst [vmem:[#allocation3 + $0x10] sm:$0xff] %v677
    %686 = vst [vmem:[#allocation3 + $0x18] sm:$0xff] %v678
    %687 = vst [vmem:[#allocation3 + $0x20] sm:$0xff] %v679
    %688 = vst [vmem:[#allocation3 + $0x28] sm:$0xff] %v680
    %689 = vst [vmem:[#allocation3 + $0x30] sm:$0xff] %v681
    %690 = vst [vmem:[#allocation3 + $0x38] sm:$0xff] %v682
    // Predicated region
    $region6: #{tpu_custom_call.1} parent=1 // pred_check
      _
    $region7: #{tpu_custom_call.1} parent=1 // pred_check_branch
      %692 = sbr.rel (0) target = $region9
    $region8: #{tpu_custom_call.1} parent=1 // pred_region
      %694 = vsyncadd [#allocation4], 0
      %s696 = sshll.u32 [#allocation3], 4
      %s697 = int_to_ptr.vmem [resolvable:$true] %s696
      %s698 = sshll.u32 %s1, 4
      %s699 = int_to_ptr.hbm [resolvable:$true] %s698
      %701 = dma.vmem_to_hbm [thread:$0]  %s697, 1024, %s699, [#allocation4]
    $region9: #{tpu_custom_call.1} parent=1 // pred_fallthru
      _
    // Predicated region
    $region10: #{tpu_custom_call.1} parent=1 // pred_check
      _
    $region11: #{tpu_custom_call.1} parent=1 // pred_check_branch
      %703 = sbr.rel (0) target = $region13
    $region12: #{tpu_custom_call.1} parent=1 // pred_region
      %705 = dma.done [#allocation4], 1024
    $region13: #{tpu_custom_call.1} parent=1 // pred_fallthru
      _
    %706 = vsyncpa [#allocation4], 1

</llo_original>
